<compile_context>
chip_gen: v6e
topology: v6e:2x2x1
jax: 0.10.0
libtpu: 0.0.40
codegen_flags: <defaults>
</compile_context>

<pallas_src>
import jax
import jax.numpy as jnp
from jax.experimental import pallas as pl
from jax.experimental.pallas import tpu as pltpu


def identity(x: jax.Array) -> jax.Array:
    """Optimal identity: zero HBM traffic, zero kernel launches."""
    return x


def _make_hbm_copy_kernel(rows: int, chunk_rows: int, n_chunks: int, nbuf: int):
    """Chunked HBM->HBM copy: up to `nbuf` DMAs in flight (ring of semaphores).

    All chunk offsets/sizes are static Python ints, so the loop unrolls at
    trace time into plain start/wait pairs with no scalar control flow.
    """

    def kernel(x_hbm, o_hbm, sems):
        def _copy(c):
            lo = c * chunk_rows
            sz = min(chunk_rows, rows - lo)
            return pltpu.make_async_copy(
                x_hbm.at[pl.ds(lo, sz)],
                o_hbm.at[pl.ds(lo, sz)],
                sems.at[c % nbuf],
            )

        # Prime up to nbuf DMAs, then wait/start in a sliding window so the
        # DMA queue stays full while earlier chunks complete.
        for c in range(min(nbuf, n_chunks)):
            _copy(c).start()
        for c in range(n_chunks):
            _copy(c).wait()
            nxt = c + nbuf
            if nxt < n_chunks:
                _copy(nxt).start()

    return kernel


def identity_pallas(x: jax.Array) -> jax.Array:
    """Identity copy as chunked HBM->HBM DMA through a Pallas TPU kernel.

    Works for any shape/dtype.  No padding, no reshapes that would force a
    relayout, no VMEM staging: the original array is copied in place-shape,
    chunked along the leading axis into ~4 MiB pieces with up to 4 DMAs in
    flight.
    """
    if x.size == 0:
        return x

    orig_shape = x.shape
    x2 = x.reshape(1) if x.ndim == 0 else x  # 0-d -> (1,), metadata only

    rows = x2.shape[0]
    itemsize = jnp.dtype(x2.dtype).itemsize
    total_bytes = x2.size * itemsize
    row_bytes = max(1, (x2.size // rows) * itemsize)

    # Chunk along the leading axis: ~4 MiB per DMA, at most 64 chunks so the
    # trace-time unroll stays tiny.  Small arrays are a single full-array DMA.
    TARGET_CHUNK_BYTES = 4 << 20
    MAX_CHUNKS = 64
    if total_bytes <= TARGET_CHUNK_BYTES:
        chunk_rows = rows
    else:
        chunk_rows = max(1, TARGET_CHUNK_BYTES // row_bytes)
        chunk_rows = max(chunk_rows, -(-rows // MAX_CHUNKS))
    chunk_rows = min(chunk_rows, rows)
    n_chunks = -(-rows // chunk_rows)
    nbuf = min(4, n_chunks)

    out = pl.pallas_call(
        _make_hbm_copy_kernel(rows, chunk_rows, n_chunks, nbuf),
        out_shape=jax.ShapeDtypeStruct(x2.shape, x2.dtype),
        in_specs=[pl.BlockSpec(memory_space=pl.ANY)],   # raw HBM ref, no auto-DMA
        out_specs=pl.BlockSpec(memory_space=pl.ANY),    # raw HBM ref, no auto-DMA
        scratch_shapes=[pltpu.SemaphoreType.DMA((nbuf,))],
        cost_estimate=pl.CostEstimate(
            flops=0,
            transcendentals=0,
            bytes_accessed=2 * total_bytes,
        ),
    )(x2)

    return out.reshape(orig_shape)


class BaseNetwork:
    """JAX/Pallas port of the PyTorch BaseNetwork.

    No parameters, no submodules.  forward(*args, **kwargs) is a no-op and
    returns None, exactly mirroring the PyTorch reference.
    """

    def __init__(self, **kwargs):
        # PyTorch __init__ is empty: no parameters to create.
        pass

    def forward(self, *args, **kwargs):
        # PyTorch forward is `pass` -> returns None.
        return None

    def init_params(self):
        # No Conv2d / BatchNorm2d / Linear submodules on the base class.
        return

    def freeze(self):
        # No parameters; nothing to freeze.
        return

    def unfreeze(self):
        # No parameters; nothing to unfreeze.
        return

    # TODO(synk): save_weights/load_weights are host-side file I/O (torch.save /
    # torch.load) with no device-kernel equivalent; intentionally omitted.


if __name__ == "__main__":
    key = jax.random.PRNGKey(0)
    k0, k1 = jax.random.split(key)

    # Small NCHW input consistent with a conv-style network.
    x = jax.random.normal(k0, (2, 4, 16, 16), dtype=jnp.float32)

    net = BaseNetwork()

    # Reference-exact forward semantics: returns None.
    out = net.forward(x)
    assert out is None

    # Zero-copy fast path (the actual recommended identity).
    y_fast = identity(x)
    assert y_fast is x

    # HBM->HBM DMA copy kernel on the main input.
    y = jax.block_until_ready(identity_pallas(x))
    assert y.shape == x.shape and y.dtype == x.dtype
    assert bool(jnp.all(y == x))

    # Exercise the no-pad path on a non-128-aligned bf16 shape as well.
    z = jax.random.normal(k1, (3, 5, 7), dtype=jnp.bfloat16)
    zc = jax.block_until_ready(identity_pallas(z))
    assert zc.shape == z.shape and zc.dtype == z.dtype
    assert bool(jnp.all(zc == z))

    print("KERNEL_OK")
</pallas_src>

<mosaic_0001>
module attributes {stable_mosaic.version = 11 : i64} {
  func.func @kernel(%arg0: memref<2x4x16x16xf32, #tpu.memory_space<any>>, %arg1: memref<2x4x16x16xf32, #tpu.memory_space<any>>, %arg2: memref<1x!tpu.dma_semaphore, #tpu.memory_space<semaphore_mem>>) attributes {dimension_semantics = [], scalar_prefetch = 0 : i64, scratch_operands = 1 : i64, tpu.core_type = #tpu.core_type<tc>} {
    %c0_i32 = arith.constant 0 : i32
    %c0_i32_0 = arith.constant 0 : i32
    %c0_i32_1 = arith.constant 0 : i32
    %c0_i32_2 = arith.constant 0 : i32
    %c0_i32_3 = arith.constant 0 : i32
    %0 = tpu.memref_slice %arg0[%c0_i32_0, %c0_i32_1, %c0_i32_2, %c0_i32_3] : memref<2x4x16x16xf32, #tpu.memory_space<any>> -> memref<2x4x16x16xf32, #tpu.memory_space<any>>
    %c0_i32_4 = arith.constant 0 : i32
    %c0_i32_5 = arith.constant 0 : i32
    %c0_i32_6 = arith.constant 0 : i32
    %c0_i32_7 = arith.constant 0 : i32
    %1 = tpu.memref_slice %arg1[%c0_i32_4, %c0_i32_5, %c0_i32_6, %c0_i32_7] : memref<2x4x16x16xf32, #tpu.memory_space<any>> -> memref<2x4x16x16xf32, #tpu.memory_space<any>>
    %2 = tpu.memref_slice %arg2[%c0_i32] : memref<1x!tpu.dma_semaphore, #tpu.memory_space<semaphore_mem>> -> memref<1x!tpu.dma_semaphore, #tpu.memory_space<semaphore_mem>>
    %3 = tpu.memref_squeeze %2 : memref<1x!tpu.dma_semaphore, #tpu.memory_space<semaphore_mem>> -> memref<!tpu.dma_semaphore, #tpu.memory_space<semaphore_mem>>
    tpu.enqueue_dma source(%0 : memref<2x4x16x16xf32, #tpu.memory_space<any>>) target(%1 : memref<2x4x16x16xf32, #tpu.memory_space<any>>) target_semaphore(%3 : memref<!tpu.dma_semaphore, #tpu.memory_space<semaphore_mem>>)
    %c0_i32_8 = arith.constant 0 : i32
    %c0_i32_9 = arith.constant 0 : i32
    %c0_i32_10 = arith.constant 0 : i32
    %c0_i32_11 = arith.constant 0 : i32
    %c0_i32_12 = arith.constant 0 : i32
    %4 = tpu.memref_slice %arg0[%c0_i32_9, %c0_i32_10, %c0_i32_11, %c0_i32_12] : memref<2x4x16x16xf32, #tpu.memory_space<any>> -> memref<2x4x16x16xf32, #tpu.memory_space<any>>
    %c0_i32_13 = arith.constant 0 : i32
    %c0_i32_14 = arith.constant 0 : i32
    %c0_i32_15 = arith.constant 0 : i32
    %c0_i32_16 = arith.constant 0 : i32
    %5 = tpu.memref_slice %arg1[%c0_i32_13, %c0_i32_14, %c0_i32_15, %c0_i32_16] : memref<2x4x16x16xf32, #tpu.memory_space<any>> -> memref<2x4x16x16xf32, #tpu.memory_space<any>>
    %6 = tpu.memref_slice %arg2[%c0_i32_8] : memref<1x!tpu.dma_semaphore, #tpu.memory_space<semaphore_mem>> -> memref<1x!tpu.dma_semaphore, #tpu.memory_space<semaphore_mem>>
    %7 = tpu.memref_squeeze %6 : memref<1x!tpu.dma_semaphore, #tpu.memory_space<semaphore_mem>> -> memref<!tpu.dma_semaphore, #tpu.memory_space<semaphore_mem>>
    tpu.wait_dma2 semaphore(%7 : memref<!tpu.dma_semaphore, #tpu.memory_space<semaphore_mem>>) src(%4 : memref<2x4x16x16xf32, #tpu.memory_space<any>>) dst(%5 : memref<2x4x16x16xf32, #tpu.memory_space<any>>)
    return
  }
}

</mosaic_0001>

<llo_original>
// kernel: tpu_custom_call.1
$region0: #{tpu_custom_call.1}
  #allocation0 [shape = 'u32[]', space=smem, size = 0x4, offset = 0x4, fixed_abs, tag = 'smem constant byte address 0x4 - core index']
  #allocation1 [shape = 'u32[144,128]{1,0:T(1,128)}', space=vmem, size = 0x12000, scoped, tag = 'internal scratch']
  #allocation2 [shape = 's32[1]{0}', space=sflag, size = 0x4, scoped, tag = 'scratch operand']
  #allocation3 [shape = 's32[]', space=sflag, size = 0x4, offset = 0, fixed_abs, tag = 'sflag constant byte address 0x0 - dummy sync flag']
  #allocation4 [shape = 'u32[0]{0}', space=smem, size = 0, offset = 0, fixed_abs, tag = 'smem constant byte address 0x0 - null']
  %s0 = inlined_call_operand.hbm [shape: f32[2,4,16,16], index: 0, kind: input, shape index: {}]
  %s1 = inlined_call_operand.hbm [shape: f32[2,4,16,16], index: 1, kind: output, shape index: {}]
  %s2 = sld [smem:[#allocation0]]
  $region2: #{tpu_custom_call.1} parent=0
    _
  %s4 = ssub.s32 1, %s2
  %s5 = scalar_select 0, %s4, %s2
  %s7 = sshll.u32 1, 14
  %s8 = sxor.u32 4294967295, %s7
  %12 = dma.general %s0, 2048, %s1, [#allocation2], 131072, [#allocation4], 0, 0
  %s13 = smul.u32 2, 4
  %s14 = smul.u32 %s13, 16
  %s15 = smul.u32 %s14, 1
  %s16 = sshll.u32 %s15, 4
  %17 = dma.done [#allocation2], %s16
  %18 = vsyncmov [#allocation2]
  %s19 = vpop.sfrf %18
  %p20 = scmp.eq.s32.totalorder %s19, 0
  %p21 = pneg %p20
  %23 = shalt.err (%p21)

</llo_original>
